<compile_context>
chip_gen: v5e
topology: v5e:2x2
jax: 0.10.0
libtpu: 0.0.40
codegen_flags: <defaults>
</compile_context>

<pallas_src>
import functools

import jax
import jax.numpy as jnp
from jax.experimental import pallas as pl
from jax.experimental.pallas import tpu as pltpu

HIDDEN = 1024
LANE = 128
SUBLANE = 8
TILE_B_MAX = 256  # MXU-matched batch tile on v6e/v7x (128 native on v5e)


def _round_up(x, m):
    return (x + m - 1) // m * m


def _pick_tile_b(b):
    """Largest batch tile (<=256, multiple of 8) that keeps pad waste low."""
    if b <= TILE_B_MAX:
        return _round_up(b, SUBLANE)
    best = SUBLANE
    best_pad = _round_up(b, SUBLANE) - b + TILE_B_MAX  # sentinel worse than any real
    for t in (256, 128, 64, 32, 16, 8):
        pad = _round_up(b, t) - b
        # prefer larger tiles; accept a larger tile if it doesn't add much waste
        if pad <= best_pad or pad <= t // 4:
            best, best_pad = t, pad
            break
    return best


def fc_layers_kernel(x_ref, w1_ref, b1_ref, w2_ref, b2_ref, o_ref):
    # x_ref  (TILE_B, D_in)       bf16   streamed per grid step
    # w1_ref (D_in, 1024)         bf16   resident
    # b1_ref (1, 1024)            f32    resident
    # w2_ref (1024, D_out_pad)    bf16   resident
    # b2_ref (1, D_out_pad)       f32    resident
    # o_ref  (TILE_B, D_out_pad)  f32    streamed per grid step
    h = jnp.dot(x_ref[...], w1_ref[...], preferred_element_type=jnp.float32)
    h = jnp.maximum(h + b1_ref[...], 0.0)               # bias + ReLU in f32 (VPU)
    out = jnp.dot(h.astype(w2_ref.dtype), w2_ref[...],  # bf16 back into the MXU
                  preferred_element_type=jnp.float32)
    o_ref[...] = (out + b2_ref[...]).astype(o_ref.dtype)


def prepare_params(w1, b1, w2, b2, compute_dtype=jnp.bfloat16):
    """One-time prep of PyTorch-layout params (outside the per-call path).

    w1: (1024, D_in), b1: (1024,), w2: (D_out, 1024), b2: (D_out,)
    Returns MXU-friendly, lane-dense tensors:
      w1t (D_in, 1024) bf16, b1r (1, 1024) f32,
      w2t (1024, D_out_pad) bf16, b2r (1, D_out_pad) f32, d_out
    """
    d_out = w2.shape[0]
    d_out_pad = _round_up(d_out, LANE)  # lane-dense output -> unmasked stores
    w1t = jnp.asarray(w1, jnp.float32).T.astype(compute_dtype)
    w2t = jnp.zeros((HIDDEN, d_out_pad), compute_dtype).at[:, :d_out].set(
        jnp.asarray(w2, jnp.float32).T.astype(compute_dtype))
    b1r = jnp.asarray(b1, jnp.float32).reshape(1, HIDDEN)
    b2r = jnp.zeros((1, d_out_pad), jnp.float32).at[:, :d_out].set(
        jnp.asarray(b2, jnp.float32).reshape(1, d_out))
    return w1t, b1r, w2t, b2r, d_out


@functools.partial(jax.jit, static_argnames=("d_out",))
def fc_layers(x, w1t, b1r, w2t, b2r, d_out):
    """x: (B, D_in) f32/bf16 -> (B, d_out) f32, same math as the PyTorch module."""
    B, d_in = x.shape
    d_out_pad = w2t.shape[1]
    compute_dtype = w1t.dtype

    # Batch tiling: fill MXU rows without excessive pad waste.
    tile_b = _pick_tile_b(B)
    b_pad = _round_up(B, tile_b)

    xc = x.astype(compute_dtype)
    if b_pad != B:
        xc = jnp.pad(xc, ((0, b_pad - B), (0, 0)))

    grid = (b_pad // tile_b,)

    flops = 2 * b_pad * HIDDEN * (d_in + d_out_pad)
    bytes_accessed = (xc.size * xc.dtype.itemsize
                      + w1t.size * w1t.dtype.itemsize
                      + w2t.size * w2t.dtype.itemsize
                      + (b1r.size + b2r.size) * 4
                      + b_pad * d_out_pad * 4)

    # VMEM budget: double-buffered x/out tiles + resident weights + live hidden.
    vmem_bytes = (2 * tile_b * d_in * xc.dtype.itemsize
                  + 2 * tile_b * d_out_pad * 4
                  + 2 * (w1t.size + w2t.size) * w1t.dtype.itemsize
                  + 2 * (b1r.size + b2r.size) * 4
                  + 2 * tile_b * HIDDEN * 4)
    vmem_limit = int(min(max(int(vmem_bytes * 1.5) + (4 << 20), 32 << 20), 100 << 20))
    # TODO(synk): for very large D_in/D_out on v7x (64 MiB VMEM) add a D_out grid
    # axis so only a slab of w2 stays resident; unnecessary at these sizes.

    out_pad = pl.pallas_call(
        fc_layers_kernel,
        out_shape=jax.ShapeDtypeStruct((b_pad, d_out_pad), jnp.float32),
        grid_spec=pltpu.PrefetchScalarGridSpec(
            num_scalar_prefetch=0,
            grid=grid,
            in_specs=[
                pl.BlockSpec((tile_b, d_in), lambda i: (i, 0)),       # x: streamed
                pl.BlockSpec((d_in, HIDDEN), lambda i: (0, 0)),       # w1t: resident
                pl.BlockSpec((1, HIDDEN), lambda i: (0, 0)),          # b1: resident
                pl.BlockSpec((HIDDEN, d_out_pad), lambda i: (0, 0)),  # w2t: resident
                pl.BlockSpec((1, d_out_pad), lambda i: (0, 0)),       # b2: resident
            ],
            out_specs=pl.BlockSpec((tile_b, d_out_pad), lambda i: (i, 0)),
        ),
        compiler_params=pltpu.CompilerParams(
            dimension_semantics=("parallel",),  # shard batch tiles over v7x's 2 TCs
            vmem_limit_bytes=vmem_limit,
        ),
        cost_estimate=pl.CostEstimate(
            flops=flops, transcendentals=0, bytes_accessed=bytes_accessed),
    )(xc, w1t, b1r, w2t, b2r)

    return out_pad[:B, :d_out]


def init_params(key, input_size, output_size):
    """Deterministic init mimicking PyTorch nn.Linear default (uniform +-1/sqrt(fan_in))."""
    k1, k2, k3, k4 = jax.random.split(key, 4)
    bound1 = 1.0 / jnp.sqrt(jnp.float32(input_size))
    bound2 = 1.0 / jnp.sqrt(jnp.float32(HIDDEN))
    w1 = jax.random.uniform(k1, (HIDDEN, input_size), jnp.float32, -bound1, bound1)
    b1 = jax.random.uniform(k2, (HIDDEN,), jnp.float32, -bound1, bound1)
    w2 = jax.random.uniform(k3, (output_size, HIDDEN), jnp.float32, -bound2, bound2)
    b2 = jax.random.uniform(k4, (output_size,), jnp.float32, -bound2, bound2)
    return w1, b1, w2, b2


if __name__ == "__main__":
    input_size = 32
    output_size = 16
    batch = 8

    key = jax.random.PRNGKey(0)
    kx, kp = jax.random.split(key)
    x = jax.random.normal(kx, (batch, input_size), jnp.float32)
    w1, b1, w2, b2 = init_params(kp, input_size, output_size)

    # One-time param prep (transpose / pad / bf16 cast) -- NOT in the per-call path.
    w1t, b1r, w2t, b2r, d_out = prepare_params(w1, b1, w2, b2)

    out = fc_layers(x, w1t, b1r, w2t, b2r, d_out)
    out = jax.block_until_ready(out)
    assert out.shape == (batch, output_size)

    # Reference with the same bf16-rounded operands and f32 accumulation, matching
    # the kernel's numerics (PyTorch f32 math differs only by bf16 rounding).
    rt = lambda a: a.astype(jnp.bfloat16).astype(jnp.float32)
    h_ref = jnp.maximum(rt(x) @ rt(w1).T + b1, 0.0)
    out_ref = rt(h_ref) @ rt(w2).T + b2
    assert jnp.allclose(out, out_ref, atol=1e-2, rtol=1e-2), \
        float(jnp.max(jnp.abs(out - out_ref)))

    print("KERNEL_OK")
</pallas_src>

<mosaic_0001>
module attributes {stable_mosaic.version = 11 : i64} {
  func.func @fc_layers_kernel(%arg0: i32, %arg1: memref<8x32xbf16, #tpu.memory_space<vmem>>, %arg2: memref<32x1024xbf16, #tpu.memory_space<vmem>>, %arg3: memref<1x1024xf32, #tpu.memory_space<vmem>>, %arg4: memref<1024x128xbf16, #tpu.memory_space<vmem>>, %arg5: memref<1x128xf32, #tpu.memory_space<vmem>>, %arg6: memref<8x128xf32, #tpu.memory_space<vmem>>) attributes {dimension_semantics = [#tpu.dimension_semantics<parallel>], iteration_bounds = array<i64: 1>, scalar_prefetch = 0 : i64, scratch_operands = 0 : i64, tpu.core_type = #tpu.core_type<tc>, window_params = [{transform_indices = @transform_0, window_bounds = array<i64: 8, 32>}, {pipeline_mode = #tpu.pipeline_mode<synchronous>, transform_indices = @transform_1, window_bounds = array<i64: 32, 1024>}, {pipeline_mode = #tpu.pipeline_mode<synchronous>, transform_indices = @transform_2, window_bounds = array<i64: 1, 1024>}, {pipeline_mode = #tpu.pipeline_mode<synchronous>, transform_indices = @transform_3, window_bounds = array<i64: 1024, 128>}, {pipeline_mode = #tpu.pipeline_mode<synchronous>, transform_indices = @transform_4, window_bounds = array<i64: 1, 128>}, {transform_indices = @transform_5, window_bounds = array<i64: 8, 128>}]} {
    %c0 = arith.constant 0 : index
    %c0_0 = arith.constant 0 : index
    %0 = vector.load %arg1[%c0, %c0_0] : memref<8x32xbf16, #tpu.memory_space<vmem>>, vector<8x32xbf16>
    %c0_1 = arith.constant 0 : index
    %c0_2 = arith.constant 0 : index
    %1 = vector.load %arg2[%c0_1, %c0_2] : memref<32x1024xbf16, #tpu.memory_space<vmem>>, vector<32x1024xbf16>
    %cst = arith.constant dense<0.000000e+00> : vector<8x1024xf32>
    %2 = tpu.matmul %0, %1, %cst {dimension_numbers = #tpu.dot_dimension_numbers<[1], [0], [0], [1], [0, 0, 1, 1], [], []>} : vector<8x32xbf16>, vector<32x1024xbf16>, vector<8x1024xf32> -> vector<8x1024xf32>
    %c0_3 = arith.constant 0 : index
    %c0_4 = arith.constant 0 : index
    %3 = vector.load %arg3[%c0_3, %c0_4] : memref<1x1024xf32, #tpu.memory_space<vmem>>, vector<1x1024xf32>
    %4 = vector.broadcast %3 : vector<1x1024xf32> to vector<8x1024xf32>
    %5 = arith.addf %2, %4 : vector<8x1024xf32>
    %cst_5 = arith.constant 0.000000e+00 : f32
    %6 = vector.broadcast %cst_5 : f32 to vector<8x1024xf32>
    %7 = arith.maximumf %5, %6 : vector<8x1024xf32>
    %8 = arith.truncf %7 : vector<8x1024xf32> to vector<8x1024xbf16>
    %c0_6 = arith.constant 0 : index
    %c0_7 = arith.constant 0 : index
    %9 = vector.load %arg4[%c0_6, %c0_7] : memref<1024x128xbf16, #tpu.memory_space<vmem>>, vector<1024x128xbf16>
    %cst_8 = arith.constant dense<0.000000e+00> : vector<8x128xf32>
    %10 = tpu.matmul %8, %9, %cst_8 {dimension_numbers = #tpu.dot_dimension_numbers<[1], [0], [0], [1], [0, 0, 1, 1], [], []>} : vector<8x1024xbf16>, vector<1024x128xbf16>, vector<8x128xf32> -> vector<8x128xf32>
    %c0_9 = arith.constant 0 : index
    %c0_10 = arith.constant 0 : index
    %11 = vector.load %arg5[%c0_9, %c0_10] : memref<1x128xf32, #tpu.memory_space<vmem>>, vector<1x128xf32>
    %12 = vector.broadcast %11 : vector<1x128xf32> to vector<8x128xf32>
    %13 = arith.addf %10, %12 : vector<8x128xf32>
    %c0_11 = arith.constant 0 : index
    %c0_12 = arith.constant 0 : index
    %14 = vector.load %arg6[%c0_11, %c0_12] : memref<8x128xf32, #tpu.memory_space<vmem>>, vector<8x128xf32>
    tpu.vector_store %arg6[%c0_11, %c0_12], %13 {strides = array<i32>} : memref<8x128xf32, #tpu.memory_space<vmem>>, vector<8x128xf32>,
    return
  }
  func.func @transform_0(%arg0: i32) -> (i32, i32) {
    %c0_i32 = arith.constant 0 : i32
    %c0_i32_0 = arith.constant 0 : i32
    return %arg0, %c0_i32 : i32, i32
  }
  func.func @transform_1(%arg0: i32) -> (i32, i32) {
    %c0_i32 = arith.constant 0 : i32
    %c0_i32_0 = arith.constant 0 : i32
    %c0_i32_1 = arith.constant 0 : i32
    return %c0_i32, %c0_i32_0 : i32, i32
  }
  func.func @transform_2(%arg0: i32) -> (i32, i32) {
    %c0_i32 = arith.constant 0 : i32
    %c0_i32_0 = arith.constant 0 : i32
    %c0_i32_1 = arith.constant 0 : i32
    return %c0_i32, %c0_i32_0 : i32, i32
  }
  func.func @transform_3(%arg0: i32) -> (i32, i32) {
    %c0_i32 = arith.constant 0 : i32
    %c0_i32_0 = arith.constant 0 : i32
    %c0_i32_1 = arith.constant 0 : i32
    return %c0_i32, %c0_i32_0 : i32, i32
  }
  func.func @transform_4(%arg0: i32) -> (i32, i32) {
    %c0_i32 = arith.constant 0 : i32
    %c0_i32_0 = arith.constant 0 : i32
    %c0_i32_1 = arith.constant 0 : i32
    return %c0_i32, %c0_i32_0 : i32, i32
  }
  func.func @transform_5(%arg0: i32) -> (i32, i32) {
    %c0_i32 = arith.constant 0 : i32
    %c0_i32_0 = arith.constant 0 : i32
    return %arg0, %c0_i32 : i32, i32
  }
}

</mosaic_0001>

<llo_original>
// kernel: fc_layers.1
$region0: #{fc_layers.1}
  #allocation0 [shape = 'u32[]', space=smem, size = 0x4, offset = 0x4, fixed_abs, tag = 'smem constant byte address 0x4 - core index']
  #allocation1 [shape = 'u32[72,128]{1,0:T(1,128)}', space=vmem, size = 0x9000, scoped, tag = 'internal scratch']
  %s0 = inlined_call_operand.vmem [shape: bf16[8,32], index: 0, kind: input, shape index: {}]
  %s1 = inlined_call_operand.hbm [shape: bf16[32,1024], index: 1, kind: input, shape index: {}]
  %s2 = inlined_call_operand.vmem [shape: f32[1,1024], index: 2, kind: input, shape index: {}]
  %s3 = inlined_call_operand.hbm [shape: bf16[1024,128], index: 3, kind: input, shape index: {}]
  %s4 = inlined_call_operand.vmem [shape: f32[1,128], index: 4, kind: input, shape index: {}]
  %s5 = inlined_call_operand.hbm [shape: f32[8,128], index: 5, kind: output, shape index: {}]
  %s6 = sld [smem:[#allocation0]]
  $region38: #{fc_layers.1} parent=0
    _
  %s8 = ssub.s32 1, %s6
  %s9 = scalar_select 0, %s8, %s6
  $region1: #{fc_layers.1} parent=0
    #allocation2 [shape = 'u8[65536]{0}', space=vmem, size = 0x10000, scoped, tag = 'input window, operand 1, single buffered']
    #allocation3 [shape = 's32[1]{0}', space=sflag, size = 0x4, scoped, tag = 'scoped memory for fc_layers.1']
    #allocation4 [shape = 's32[1]{0}', space=sflag, size = 0x4, scoped, tag = 'scoped memory for fc_layers.1']
    #allocation5 [shape = 'u8[262144]{0}', space=vmem, size = 0x40000, scoped, tag = 'input window, operand 3, single buffered']
    #allocation6 [shape = 's32[1]{0}', space=sflag, size = 0x4, scoped, tag = 'scoped memory for fc_layers.1']
    #allocation7 [shape = 'u8[4096]{0}', space=vmem, size = 0x1000, scoped, tag = 'output window, operand 0, single buffered']
    %10 = vsyncpa [#allocation3], 0
    %11 = vsyncpa [#allocation6], 0
    %12 = vsyncpa [#allocation4], 0
    // Predicated region
    $region2: #{fc_layers.1} parent=1 // pred_check
      _
    $region3: #{fc_layers.1} parent=1 // pred_check_branch
      %14 = sbr.rel (0) target = $region5
    $region4: #{fc_layers.1} parent=1 // pred_region
      _
    $region5: #{fc_layers.1} parent=1 // pred_fallthru
      _
    // Predicated region
    $region6: #{fc_layers.1} parent=1 // pred_check
      _
    $region7: #{fc_layers.1} parent=1 // pred_check_branch
      %16 = sbr.rel (0) target = $region9
    $region8: #{fc_layers.1} parent=1 // pred_region
      %18 = vsyncadd [#allocation3], 0
      %s19 = sshll.u32 %s1, 4
      %s20 = int_to_ptr.hbm [resolvable:$true] %s19
      %s21 = sshll.u32 [#allocation2], 4
      %s22 = int_to_ptr.vmem [resolvable:$true] %s21
      %27 = dma.hbm_to_vmem [thread:$0]  %s20, 2048, %s22, [#allocation3], 512, 512, 32
    $region9: #{fc_layers.1} parent=1 // pred_fallthru
      _
    // Predicated region
    $region10: #{fc_layers.1} parent=1 // pred_check
      _
    $region11: #{fc_layers.1} parent=1 // pred_check_branch
      %29 = sbr.rel (0) target = $region13
    $region12: #{fc_layers.1} parent=1 // pred_region
      _
    $region13: #{fc_layers.1} parent=1 // pred_fallthru
      _
    // Predicated region
    $region14: #{fc_layers.1} parent=1 // pred_check
      _
    $region15: #{fc_layers.1} parent=1 // pred_check_branch
      %31 = sbr.rel (0) target = $region17
    $region16: #{fc_layers.1} parent=1 // pred_region
      %33 = vsyncadd [#allocation6], 0
      %s34 = sshll.u32 %s3, 4
      %s35 = int_to_ptr.hbm [resolvable:$true] %s34
      %s36 = sshll.u32 [#allocation5], 4
      %s37 = int_to_ptr.vmem [resolvable:$true] %s36
      %42 = dma.hbm_to_vmem [thread:$0]  %s35, 8192, %s37, [#allocation6], 64, 64, 4
    $region17: #{fc_layers.1} parent=1 // pred_fallthru
      _
    // Predicated region
    $region18: #{fc_layers.1} parent=1 // pred_check
      _
    $region19: #{fc_layers.1} parent=1 // pred_check_branch
      %44 = sbr.rel (0) target = $region21
    $region20: #{fc_layers.1} parent=1 // pred_region
      _
    $region21: #{fc_layers.1} parent=1 // pred_fallthru
      _
    // Predicated region
    $region22: #{fc_layers.1} parent=1 // pred_check
      _
    $region23: #{fc_layers.1} parent=1 // pred_check_branch
      %46 = sbr.rel (0) target = $region25
    $region24: #{fc_layers.1} parent=1 // pred_region
      %48 = dma.done [#allocation3], 2048
    $region25: #{fc_layers.1} parent=1 // pred_fallthru
      _
    // Predicated region
    $region26: #{fc_layers.1} parent=1 // pred_check
      _
    $region27: #{fc_layers.1} parent=1 // pred_check_branch
      %50 = sbr.rel (0) target = $region29
    $region28: #{fc_layers.1} parent=1 // pred_region
      %52 = dma.done [#allocation6], 8192
    $region29: #{fc_layers.1} parent=1 // pred_fallthru
      _
    %v54 = vld [vmem:[%s0] sm:$0xf]
    %v55 = vld [vmem:[#allocation2] sm:$0xff]
    %v56 = vld [vmem:[#allocation2 + $0x8] sm:$0xff]
    %v57 = vld [vmem:[#allocation2 + $0x10] sm:$0xff]
    %v58 = vld [vmem:[#allocation2 + $0x18] sm:$0xff]
    %v59 = vld [vmem:[#allocation2 + $0x20] sm:$0xff]
    %v60 = vld [vmem:[#allocation2 + $0x28] sm:$0xff]
    %v61 = vld [vmem:[#allocation2 + $0x30] sm:$0xff]
    %v62 = vld [vmem:[#allocation2 + $0x38] sm:$0xff]
    %v63 = vld [vmem:[#allocation2 + $0x40] sm:$0xff]
    %v64 = vld [vmem:[#allocation2 + $0x48] sm:$0xff]
    %v65 = vld [vmem:[#allocation2 + $0x50] sm:$0xff]
    %v66 = vld [vmem:[#allocation2 + $0x58] sm:$0xff]
    %v67 = vld [vmem:[#allocation2 + $0x60] sm:$0xff]
    %v68 = vld [vmem:[#allocation2 + $0x68] sm:$0xff]
    %v69 = vld [vmem:[#allocation2 + $0x70] sm:$0xff]
    %v70 = vld [vmem:[#allocation2 + $0x78] sm:$0xff]
    %v71 = vld [vmem:[%s2] sm:$0xff]
    %v73 = vperm.slane %v71, 0
    %v74 = vperm.slane %v71, 1
    %v75 = vperm.slane %v71, 2
    %v76 = vperm.slane %v71, 3
    %v77 = vperm.slane %v71, 4
    %v78 = vperm.slane %v71, 5
    %v79 = vperm.slane %v71, 6
    %v80 = vperm.slane %v71, 7
    %v105 = vunpack.c.l.b16 %v55
    %v106 = vunpack.c.h.b16 %v55
    %v107 = vunpack.c.l.b16 %v56
    %v108 = vunpack.c.h.b16 %v56
    %v109 = vunpack.c.l.b16 %v57
    %v110 = vunpack.c.h.b16 %v57
    %v111 = vunpack.c.l.b16 %v58
    %v112 = vunpack.c.h.b16 %v58
    %v113 = vunpack.c.l.b16 %v59
    %v114 = vunpack.c.h.b16 %v59
    %v115 = vunpack.c.l.b16 %v60
    %v116 = vunpack.c.h.b16 %v60
    %v117 = vunpack.c.l.b16 %v61
    %v118 = vunpack.c.h.b16 %v61
    %v119 = vunpack.c.l.b16 %v62
    %v120 = vunpack.c.h.b16 %v62
    %v121 = vunpack.c.l.b16 %v63
    %v122 = vunpack.c.h.b16 %v63
    %v123 = vunpack.c.l.b16 %v64
    %v124 = vunpack.c.h.b16 %v64
    %v125 = vunpack.c.l.b16 %v65
    %v126 = vunpack.c.h.b16 %v65
    %v127 = vunpack.c.l.b16 %v66
    %v128 = vunpack.c.h.b16 %v66
    %v129 = vunpack.c.l.b16 %v67
    %v130 = vunpack.c.h.b16 %v67
    %v131 = vunpack.c.l.b16 %v68
    %v132 = vunpack.c.h.b16 %v68
    %v133 = vunpack.c.l.b16 %v69
    %v134 = vunpack.c.h.b16 %v69
    %v135 = vunpack.c.l.b16 %v70
    %v136 = vunpack.c.h.b16 %v70
    %v137 = vpack.c.b16 %v113, %v105
    %v138 = vpack.c.b16 %v114, %v106
    %v139 = vpack.c.b16 %v115, %v107
    %v140 = vpack.c.b16 %v116, %v108
    %v141 = vpack.c.b16 %v117, %v109
    %v142 = vpack.c.b16 %v118, %v110
    %v143 = vpack.c.b16 %v119, %v111
    %v144 = vpack.c.b16 %v120, %v112
    %v145 = vpack.c.b16 %v129, %v121
    %v146 = vpack.c.b16 %v130, %v122
    %v147 = vpack.c.b16 %v131, %v123
    %v148 = vpack.c.b16 %v132, %v124
    %v149 = vpack.c.b16 %v133, %v125
    %v150 = vpack.c.b16 %v134, %v126
    %v151 = vpack.c.b16 %v135, %v127
    %v152 = vpack.c.b16 %v136, %v128
    %vm169 = vcmask 261120
    %v171 = vsel %vm169, %v54, 0
    %173 = vmatpush.bf16.msra.mxu0 0
    %174 = vmatpush.bf16.msra.mxu0 0
    %175 = vmatpush.bf16.msra.mxu0 0
    %176 = vmatpush.bf16.msra.mxu0 0
    %177 = vmatpush.bf16.msra.mxu0 0
    %178 = vmatpush.bf16.msra.mxu0 0
    %179 = vmatpush.bf16.msra.mxu0 %v145
    %180 = vmatpush.bf16.msra.mxu0 %v137
    %181 = vmatmul.bf16.gmra.mxu0 %v171
    %v182 = vpop.f32.mrf.mxu0
    %v183 = vadd.f32 %v73, %v182
    %v184 = vpop.f32.mrf.mxu0
    %185 = vdwg.mxu0
    %186 = vmatpush.bf16.msra.mxu0 0
    %187 = vmatpush.bf16.msra.mxu0 0
    %188 = vmatpush.bf16.msra.mxu0 0
    %189 = vmatpush.bf16.msra.mxu0 0
    %190 = vmatpush.bf16.msra.mxu0 0
    %191 = vmatpush.bf16.msra.mxu0 0
    %192 = vmatpush.bf16.msra.mxu0 %v146
    %193 = vmatpush.bf16.msra.mxu0 %v138
    %194 = vmatmul.bf16.gmra.mxu0 %v171
    %v195 = vpop.f32.mrf.mxu0
    %v196 = vadd.f32 %v74, %v195
    %v197 = vpop.f32.mrf.mxu0
    %198 = vdwg.mxu0
    %199 = vmatpush.bf16.msra.mxu0 0
    %200 = vmatpush.bf16.msra.mxu0 0
    %201 = vmatpush.bf16.msra.mxu0 0
    %202 = vmatpush.bf16.msra.mxu0 0
    %203 = vmatpush.bf16.msra.mxu0 0
    %204 = vmatpush.bf16.msra.mxu0 0
    %205 = vmatpush.bf16.msra.mxu0 %v147
    %206 = vmatpush.bf16.msra.mxu0 %v139
    %207 = vmatmul.bf16.gmra.mxu0 %v171
    %v208 = vpop.f32.mrf.mxu0
    %v209 = vadd.f32 %v75, %v208
    %v210 = vpop.f32.mrf.mxu0
    %211 = vdwg.mxu0
    %212 = vmatpush.bf16.msra.mxu0 0
    %213 = vmatpush.bf16.msra.mxu0 0
    %214 = vmatpush.bf16.msra.mxu0 0
    %215 = vmatpush.bf16.msra.mxu0 0
    %216 = vmatpush.bf16.msra.mxu0 0
    %217 = vmatpush.bf16.msra.mxu0 0
    %218 = vmatpush.bf16.msra.mxu0 %v148
    %219 = vmatpush.bf16.msra.mxu0 %v140
    %220 = vmatmul.bf16.gmra.mxu0 %v171
    %v221 = vpop.f32.mrf.mxu0
    %v222 = vadd.f32 %v76, %v221
    %v223 = vpop.f32.mrf.mxu0
    %224 = vdwg.mxu0
    %225 = vmatpush.bf16.msra.mxu0 0
    %226 = vmatpush.bf16.msra.mxu0 0
    %227 = vmatpush.bf16.msra.mxu0 0
    %228 = vmatpush.bf16.msra.mxu0 0
    %229 = vmatpush.bf16.msra.mxu0 0
    %230 = vmatpush.bf16.msra.mxu0 0
    %231 = vmatpush.bf16.msra.mxu0 %v149
    %232 = vmatpush.bf16.msra.mxu0 %v141
    %233 = vmatmul.bf16.gmra.mxu0 %v171
    %v234 = vpop.f32.mrf.mxu0
    %v235 = vadd.f32 %v77, %v234
    %v236 = vpop.f32.mrf.mxu0
    %237 = vdwg.mxu0
    %238 = vmatpush.bf16.msra.mxu0 0
    %239 = vmatpush.bf16.msra.mxu0 0
    %240 = vmatpush.bf16.msra.mxu0 0
    %241 = vmatpush.bf16.msra.mxu0 0
    %242 = vmatpush.bf16.msra.mxu0 0
    %243 = vmatpush.bf16.msra.mxu0 0
    %244 = vmatpush.bf16.msra.mxu0 %v150
    %245 = vmatpush.bf16.msra.mxu0 %v142
    %246 = vmatmul.bf16.gmra.mxu0 %v171
    %v247 = vpop.f32.mrf.mxu0
    %v248 = vadd.f32 %v78, %v247
    %v249 = vpop.f32.mrf.mxu0
    %250 = vdwg.mxu0
    %251 = vmatpush.bf16.msra.mxu0 0
    %252 = vmatpush.bf16.msra.mxu0 0
    %253 = vmatpush.bf16.msra.mxu0 0
    %254 = vmatpush.bf16.msra.mxu0 0
    %255 = vmatpush.bf16.msra.mxu0 0
    %256 = vmatpush.bf16.msra.mxu0 0
    %257 = vmatpush.bf16.msra.mxu0 %v151
    %258 = vmatpush.bf16.msra.mxu0 %v143
    %259 = vmatmul.bf16.gmra.mxu0 %v171
    %v260 = vpop.f32.mrf.mxu0
    %v261 = vadd.f32 %v79, %v260
    %v262 = vpop.f32.mrf.mxu0
    %263 = vdwg.mxu0
    %264 = vmatpush.bf16.msra.mxu0 0
    %265 = vmatpush.bf16.msra.mxu0 0
    %266 = vmatpush.bf16.msra.mxu0 0
    %267 = vmatpush.bf16.msra.mxu0 0
    %268 = vmatpush.bf16.msra.mxu0 0
    %269 = vmatpush.bf16.msra.mxu0 0
    %270 = vmatpush.bf16.msra.mxu0 %v152
    %271 = vmatpush.bf16.msra.mxu0 %v144
    %272 = vmatmul.bf16.gmra.mxu0 %v171
    %v273 = vpop.f32.mrf.mxu0
    %v274 = vadd.f32 %v80, %v273
    %v275 = vpop.f32.mrf.mxu0
    %276 = vdwg.mxu0
    %v277 = vmax.f32 %v183, 0.0
    %v278 = vmax.f32 %v196, 0.0
    %v279 = vmax.f32 %v209, 0.0
    %v280 = vmax.f32 %v222, 0.0
    %v281 = vmax.f32 %v235, 0.0
    %v282 = vmax.f32 %v248, 0.0
    %v283 = vmax.f32 %v261, 0.0
    %v284 = vmax.f32 %v274, 0.0
    %v285 = vpack.c.bf16 %v277, %v277
    %v286 = vpack.c.bf16 %v278, %v278
    %v287 = vpack.c.bf16 %v279, %v279
    %v288 = vpack.c.bf16 %v280, %v280
    %v289 = vpack.c.bf16 %v281, %v281
    %v290 = vpack.c.bf16 %v282, %v282
    %v291 = vpack.c.bf16 %v283, %v283
    %v292 = vpack.c.bf16 %v284, %v284
    %v293 = vld [vmem:[#allocation5] sm:$0xf]
    %v294 = vld [vmem:[#allocation5 + $0x4] sm:$0xf]
    %v295 = vld [vmem:[#allocation5 + $0x8] sm:$0xf]
    %v296 = vld [vmem:[#allocation5 + $0xc] sm:$0xf]
    %v297 = vld [vmem:[#allocation5 + $0x10] sm:$0xf]
    %v298 = vld [vmem:[#allocation5 + $0x14] sm:$0xf]
    %v299 = vld [vmem:[#allocation5 + $0x18] sm:$0xf]
    %v300 = vld [vmem:[#allocation5 + $0x1c] sm:$0xf]
    %v301 = vld [vmem:[#allocation5 + $0x20] sm:$0xf]
    %v302 = vld [vmem:[#allocation5 + $0x24] sm:$0xf]
    %v303 = vld [vmem:[#allocation5 + $0x28] sm:$0xf]
    %v304 = vld [vmem:[#allocation5 + $0x2c] sm:$0xf]
    %v305 = vld [vmem:[#allocation5 + $0x30] sm:$0xf]
    %v306 = vld [vmem:[#allocation5 + $0x34] sm:$0xf]
    %v307 = vld [vmem:[#allocation5 + $0x38] sm:$0xf]
    %v308 = vld [vmem:[#allocation5 + $0x3c] sm:$0xf]
    %v309 = vld [vmem:[#allocation5 + $0x40] sm:$0xf]
    %v310 = vld [vmem:[#allocation5 + $0x44] sm:$0xf]
    %v311 = vld [vmem:[#allocation5 + $0x48] sm:$0xf]
    %v312 = vld [vmem:[#allocation5 + $0x4c] sm:$0xf]
    %v313 = vld [vmem:[#allocation5 + $0x50] sm:$0xf]
    %v314 = vld [vmem:[#allocation5 + $0x54] sm:$0xf]
    %v315 = vld [vmem:[#allocation5 + $0x58] sm:$0xf]
    %v316 = vld [vmem:[#allocation5 + $0x5c] sm:$0xf]
    %v317 = vld [vmem:[#allocation5 + $0x60] sm:$0xf]
    %v318 = vld [vmem:[#allocation5 + $0x64] sm:$0xf]
    %v319 = vld [vmem:[#allocation5 + $0x68] sm:$0xf]
    %v320 = vld [vmem:[#allocation5 + $0x6c] sm:$0xf]
    %v321 = vld [vmem:[#allocation5 + $0x70] sm:$0xf]
    %v322 = vld [vmem:[#allocation5 + $0x74] sm:$0xf]
    %v323 = vld [vmem:[#allocation5 + $0x78] sm:$0xf]
    %v324 = vld [vmem:[#allocation5 + $0x7c] sm:$0xf]
    %v325 = vld [vmem:[#allocation5 + $0x80] sm:$0xf]
    %v326 = vld [vmem:[#allocation5 + $0x84] sm:$0xf]
    %v327 = vld [vmem:[#allocation5 + $0x88] sm:$0xf]
    %v328 = vld [vmem:[#allocation5 + $0x8c] sm:$0xf]
    %v329 = vld [vmem:[#allocation5 + $0x90] sm:$0xf]
    %v330 = vld [vmem:[#allocation5 + $0x94] sm:$0xf]
    %v331 = vld [vmem:[#allocation5 + $0x98] sm:$0xf]
    %v332 = vld [vmem:[#allocation5 + $0x9c] sm:$0xf]
    %v333 = vld [vmem:[#allocation5 + $0xa0] sm:$0xf]
    %v334 = vld [vmem:[#allocation5 + $0xa4] sm:$0xf]
    %v335 = vld [vmem:[#allocation5 + $0xa8] sm:$0xf]
    %v336 = vld [vmem:[#allocation5 + $0xac] sm:$0xf]
    %v337 = vld [vmem:[#allocation5 + $0xb0] sm:$0xf]
    %v338 = vld [vmem:[#allocation5 + $0xb4] sm:$0xf]
    %v339 = vld [vmem:[#allocation5 + $0xb8] sm:$0xf]
    %v340 = vld [vmem:[#allocation5 + $0xbc] sm:$0xf]
    %v341 = vld [vmem:[#allocation5 + $0xc0] sm:$0xf]
    %v342 = vld [vmem:[#allocation5 + $0xc4] sm:$0xf]
    %v343 = vld [vmem:[#allocation5 + $0xc8] sm:$0xf]
    %v344 = vld [vmem:[#allocation5 + $0xcc] sm:$0xf]
    %v345 = vld [vmem:[#allocation5 + $0xd0] sm:$0xf]
    %v346 = vld [vmem:[#allocation5 + $0xd4] sm:$0xf]
    %v347 = vld [vmem:[#allocation5 + $0xd8] sm:$0xf]
    %v348 = vld [vmem:[#allocation5 + $0xdc] sm:$0xf]
    %v349 = vld [vmem:[#allocation5 + $0xe0] sm:$0xf]
    %v350 = vld [vmem:[#allocation5 + $0xe4] sm:$0xf]
    %v351 = vld [vmem:[#allocation5 + $0xe8] sm:$0xf]
    %v352 = vld [vmem:[#allocation5 + $0xec] sm:$0xf]
    %v353 = vld [vmem:[#allocation5 + $0xf0] sm:$0xf]
    %v354 = vld [vmem:[#allocation5 + $0xf4] sm:$0xf]
    %v355 = vld [vmem:[#allocation5 + $0xf8] sm:$0xf]
    %v356 = vld [vmem:[#allocation5 + $0xfc] sm:$0xf]
    %v357 = vld [vmem:[#allocation5 + $0x100] sm:$0xf]
    %v358 = vld [vmem:[#allocation5 + $0x104] sm:$0xf]
    %v359 = vld [vmem:[#allocation5 + $0x108] sm:$0xf]
    %v360 = vld [vmem:[#allocation5 + $0x10c] sm:$0xf]
    %v361 = vld [vmem:[#allocation5 + $0x110] sm:$0xf]
    %v362 = vld [vmem:[#allocation5 + $0x114] sm:$0xf]
    %v363 = vld [vmem:[#allocation5 + $0x118] sm:$0xf]
    %v364 = vld [vmem:[#allocation5 + $0x11c] sm:$0xf]
    %v365 = vld [vmem:[#allocation5 + $0x120] sm:$0xf]
    %v366 = vld [vmem:[#allocation5 + $0x124] sm:$0xf]
    %v367 = vld [vmem:[#allocation5 + $0x128] sm:$0xf]
    %v368 = vld [vmem:[#allocation5 + $0x12c] sm:$0xf]
    %v369 = vld [vmem:[#allocation5 + $0x130] sm:$0xf]
    %v370 = vld [vmem:[#allocation5 + $0x134] sm:$0xf]
    %v371 = vld [vmem:[#allocation5 + $0x138] sm:$0xf]
    %v372 = vld [vmem:[#allocation5 + $0x13c] sm:$0xf]
    %v373 = vld [vmem:[#allocation5 + $0x140] sm:$0xf]
    %v374 = vld [vmem:[#allocation5 + $0x144] sm:$0xf]
    %v375 = vld [vmem:[#allocation5 + $0x148] sm:$0xf]
    %v376 = vld [vmem:[#allocation5 + $0x14c] sm:$0xf]
    %v377 = vld [vmem:[#allocation5 + $0x150] sm:$0xf]
    %v378 = vld [vmem:[#allocation5 + $0x154] sm:$0xf]
    %v379 = vld [vmem:[#allocation5 + $0x158] sm:$0xf]
    %v380 = vld [vmem:[#allocation5 + $0x15c] sm:$0xf]
    %v381 = vld [vmem:[#allocation5 + $0x160] sm:$0xf]
    %v382 = vld [vmem:[#allocation5 + $0x164] sm:$0xf]
    %v383 = vld [vmem:[#allocation5 + $0x168] sm:$0xf]
    %v384 = vld [vmem:[#allocation5 + $0x16c] sm:$0xf]
    %v385 = vld [vmem:[#allocation5 + $0x170] sm:$0xf]
    %v386 = vld [vmem:[#allocation5 + $0x174] sm:$0xf]
    %v387 = vld [vmem:[#allocation5 + $0x178] sm:$0xf]
    %v388 = vld [vmem:[#allocation5 + $0x17c] sm:$0xf]
    %v389 = vld [vmem:[#allocation5 + $0x180] sm:$0xf]
    %v390 = vld [vmem:[#allocation5 + $0x184] sm:$0xf]
    %v391 = vld [vmem:[#allocation5 + $0x188] sm:$0xf]
    %v392 = vld [vmem:[#allocation5 + $0x18c] sm:$0xf]
    %v393 = vld [vmem:[#allocation5 + $0x190] sm:$0xf]
    %v394 = vld [vmem:[#allocation5 + $0x194] sm:$0xf]
    %v395 = vld [vmem:[#allocation5 + $0x198] sm:$0xf]
    %v396 = vld [vmem:[#allocation5 + $0x19c] sm:$0xf]
    %v397 = vld [vmem:[#allocation5 + $0x1a0] sm:$0xf]
    %v398 = vld [vmem:[#allocation5 + $0x1a4] sm:$0xf]
    %v399 = vld [vmem:[#allocation5 + $0x1a8] sm:$0xf]
    %v400 = vld [vmem:[#allocation5 + $0x1ac] sm:$0xf]
    %v401 = vld [vmem:[#allocation5 + $0x1b0] sm:$0xf]
    %v402 = vld [vmem:[#allocation5 + $0x1b4] sm:$0xf]
    %v403 = vld [vmem:[#allocation5 + $0x1b8] sm:$0xf]
    %v404 = vld [vmem:[#allocation5 + $0x1bc] sm:$0xf]
    %v405 = vld [vmem:[#allocation5 + $0x1c0] sm:$0xf]
    %v406 = vld [vmem:[#allocation5 + $0x1c4] sm:$0xf]
    %v407 = vld [vmem:[#allocation5 + $0x1c8] sm:$0xf]
    %v408 = vld [vmem:[#allocation5 + $0x1cc] sm:$0xf]
    %v409 = vld [vmem:[#allocation5 + $0x1d0] sm:$0xf]
    %v410 = vld [vmem:[#allocation5 + $0x1d4] sm:$0xf]
    %v411 = vld [vmem:[#allocation5 + $0x1d8] sm:$0xf]
    %v412 = vld [vmem:[#allocation5 + $0x1dc] sm:$0xf]
    %v413 = vld [vmem:[#allocation5 + $0x1e0] sm:$0xf]
    %v414 = vld [vmem:[#allocation5 + $0x1e4] sm:$0xf]
    %v415 = vld [vmem:[#allocation5 + $0x1e8] sm:$0xf]
    %v416 = vld [vmem:[#allocation5 + $0x1ec] sm:$0xf]
    %v417 = vld [vmem:[#allocation5 + $0x1f0] sm:$0xf]
    %v418 = vld [vmem:[#allocation5 + $0x1f4] sm:$0xf]
    %v419 = vld [vmem:[#allocation5 + $0x1f8] sm:$0xf]
    %v420 = vld [vmem:[#allocation5 + $0x1fc] sm:$0xf]
    %v421 = vld [vmem:[%s4] sm:$0x1]
    %v423 = vperm.slane %v421, 0
    %v553 = vunpack.c.l.b16 %v293
    %v554 = vunpack.c.l.b16 %v294
    %v555 = vunpack.c.l.b16 %v295
    %v556 = vunpack.c.l.b16 %v296
    %v557 = vunpack.c.l.b16 %v297
    %v558 = vunpack.c.l.b16 %v298
    %v559 = vunpack.c.l.b16 %v299
    %v560 = vunpack.c.l.b16 %v300
    %v561 = vunpack.c.l.b16 %v301
    %v562 = vunpack.c.l.b16 %v302
    %v563 = vunpack.c.l.b16 %v303
    %v564 = vunpack.c.l.b16 %v304
    %v565 = vunpack.c.l.b16 %v305
    %v566 = vunpack.c.l.b16 %v306
    %v567 = vunpack.c.l.b16 %v307
    %v568 = vunpack.c.l.b16 %v308
    %v569 = vunpack.c.l.b16 %v309
    %v570 = vunpack.c.l.b16 %v310
    %v571 = vunpack.c.l.b16 %v311
    %v572 = vunpack.c.l.b16 %v312
    %v573 = vunpack.c.l.b16 %v313
    %v574 = vunpack.c.l.b16 %v314
    %v575 = vunpack.c.l.b16 %v315
    %v576 = vunpack.c.l.b16 %v316
    %v577 = vunpack.c.l.b16 %v317
    %v578 = vunpack.c.l.b16 %v318
    %v579 = vunpack.c.l.b16 %v319
    %v580 = vunpack.c.l.b16 %v320
    %v581 = vunpack.c.l.b16 %v321
    %v582 = vunpack.c.l.b16 %v322
    %v583 = vunpack.c.l.b16 %v323
    %v584 = vunpack.c.l.b16 %v324
    %v585 = vunpack.c.l.b16 %v325
    %v586 = vunpack.c.l.b16 %v326
    %v587 = vunpack.c.l.b16 %v327
    %v588 = vunpack.c.l.b16 %v328
    %v589 = vunpack.c.l.b16 %v329
    %v590 = vunpack.c.l.b16 %v330
    %v591 = vunpack.c.l.b16 %v331
    %v592 = vunpack.c.l.b16 %v332
    %v593 = vunpack.c.l.b16 %v333
    %v594 = vunpack.c.l.b16 %v334
    %v595 = vunpack.c.l.b16 %v335
    %v596 = vunpack.c.l.b16 %v336
    %v597 = vunpack.c.l.b16 %v337
    %v598 = vunpack.c.l.b16 %v338
    %v599 = vunpack.c.l.b16 %v339
    %v600 = vunpack.c.l.b16 %v340
    %v601 = vunpack.c.l.b16 %v341
    %v602 = vunpack.c.l.b16 %v342
    %v603 = vunpack.c.l.b16 %v343
    %v604 = vunpack.c.l.b16 %v344
    %v605 = vunpack.c.l.b16 %v345
    %v606 = vunpack.c.l.b16 %v346
    %v607 = vunpack.c.l.b16 %v347
    %v608 = vunpack.c.l.b16 %v348
    %v609 = vunpack.c.l.b16 %v349
    %v610 = vunpack.c.l.b16 %v350
    %v611 = vunpack.c.l.b16 %v351
    %v612 = vunpack.c.l.b16 %v352
    %v613 = vunpack.c.l.b16 %v353
    %v614 = vunpack.c.l.b16 %v354
    %v615 = vunpack.c.l.b16 %v355
    %v616 = vunpack.c.l.b16 %v356
    %v617 = vunpack.c.l.b16 %v357
    %v618 = vunpack.c.l.b16 %v358
    %v619 = vunpack.c.l.b16 %v359
    %v620 = vunpack.c.l.b16 %v360
    %v621 = vunpack.c.l.b16 %v361
    %v622 = vunpack.c.l.b16 %v362
    %v623 = vunpack.c.l.b16 %v363
    %v624 = vunpack.c.l.b16 %v364
    %v625 = vunpack.c.l.b16 %v365
    %v626 = vunpack.c.l.b16 %v366
    %v627 = vunpack.c.l.b16 %v367
    %v628 = vunpack.c.l.b16 %v368
    %v629 = vunpack.c.l.b16 %v369
    %v630 = vunpack.c.l.b16 %v370
    %v631 = vunpack.c.l.b16 %v371
    %v632 = vunpack.c.l.b16 %v372
    %v633 = vunpack.c.l.b16 %v373
    %v634 = vunpack.c.l.b16 %v374
    %v635 = vunpack.c.l.b16 %v375
    %v636 = vunpack.c.l.b16 %v376
    %v637 = vunpack.c.l.b16 %v377
    %v638 = vunpack.c.l.b16 %v378
    %v639 = vunpack.c.l.b16 %v379
    %v640 = vunpack.c.l.b16 %v380
    %v641 = vunpack.c.l.b16 %v381
    %v642 = vunpack.c.l.b16 %v382
    %v643 = vunpack.c.l.b16 %v383
    %v644 = vunpack.c.l.b16 %v384
    %v645 = vunpack.c.l.b16 %v385
    %v646 = vunpack.c.l.b16 %v386
    %v647 = vunpack.c.l.b16 %v387
    %v648 = vunpack.c.l.b16 %v388
    %v649 = vunpack.c.l.b16 %v389
    %v650 = vunpack.c.l.b16 %v390
    %v651 = vunpack.c.l.b16 %v391
    %v652 = vunpack.c.l.b16 %v392
    %v653 = vunpack.c.l.b16 %v393
    %v654 = vunpack.c.l.b16 %v394
    %v655 = vunpack.c.l.b16 %v395
    %v656 = vunpack.c.l.b16 %v396
    %v657 = vunpack.c.l.b16 %v397
    %v658 = vunpack.c.l.b16 %v398
    %v659 = vunpack.c.l.b16 %v399
    %v660 = vunpack.c.l.b16 %v400
    %v661 = vunpack.c.l.b16 %v401
    %v662 = vunpack.c.l.b16 %v402
    %v663 = vunpack.c.l.b16 %v403
    %v664 = vunpack.c.l.b16 %v404
    %v665 = vunpack.c.l.b16 %v405
    %v666 = vunpack.c.l.b16 %v406
    %v667 = vunpack.c.l.b16 %v407
    %v668 = vunpack.c.l.b16 %v408
    %v669 = vunpack.c.l.b16 %v409
    %v670 = vunpack.c.l.b16 %v410
    %v671 = vunpack.c.l.b16 %v411
    %v672 = vunpack.c.l.b16 %v412
    %v673 = vunpack.c.l.b16 %v413
    %v674 = vunpack.c.l.b16 %v414
    %v675 = vunpack.c.l.b16 %v415
    %v676 = vunpack.c.l.b16 %v416
    %v677 = vunpack.c.l.b16 %v417
    %v678 = vunpack.c.l.b16 %v418
    %v679 = vunpack.c.l.b16 %v419
    %v680 = vunpack.c.l.b16 %v420
    %v681 = vpack.c.b16 %v554, %v553
    %v682 = vpack.c.b16 %v556, %v555
    %v683 = vpack.c.b16 %v558, %v557
    %v684 = vpack.c.b16 %v560, %v559
    %v685 = vpack.c.b16 %v562, %v561
    %v686 = vpack.c.b16 %v564, %v563
    %v687 = vpack.c.b16 %v566, %v565
    %v688 = vpack.c.b16 %v568, %v567
    %v689 = vpack.c.b16 %v570, %v569
    %v690 = vpack.c.b16 %v572, %v571
    %v691 = vpack.c.b16 %v574, %v573
    %v692 = vpack.c.b16 %v576, %v575
    %v693 = vpack.c.b16 %v578, %v577
    %v694 = vpack.c.b16 %v580, %v579
    %v695 = vpack.c.b16 %v582, %v581
    %v696 = vpack.c.b16 %v584, %v583
    %v697 = vpack.c.b16 %v586, %v585
    %v698 = vpack.c.b16 %v588, %v587
    %v699 = vpack.c.b16 %v590, %v589
    %v700 = vpack.c.b16 %v592, %v591
    %v701 = vpack.c.b16 %v594, %v593
    %v702 = vpack.c.b16 %v596, %v595
    %v703 = vpack.c.b16 %v598, %v597
    %v704 = vpack.c.b16 %v600, %v599
    %v705 = vpack.c.b16 %v602, %v601
    %v706 = vpack.c.b16 %v604, %v603
    %v707 = vpack.c.b16 %v606, %v605
    %v708 = vpack.c.b16 %v608, %v607
    %v709 = vpack.c.b16 %v610, %v609
    %v710 = vpack.c.b16 %v612, %v611
    %v711 = vpack.c.b16 %v614, %v613
    %v712 = vpack.c.b16 %v616, %v615
    %v713 = vpack.c.b16 %v618, %v617
    %v714 = vpack.c.b16 %v620, %v619
    %v715 = vpack.c.b16 %v622, %v621
    %v716 = vpack.c.b16 %v624, %v623
    %v717 = vpack.c.b16 %v626, %v625
    %v718 = vpack.c.b16 %v628, %v627
    %v719 = vpack.c.b16 %v630, %v629
    %v720 = vpack.c.b16 %v632, %v631
    %v721 = vpack.c.b16 %v634, %v633
    %v722 = vpack.c.b16 %v636, %v635
    %v723 = vpack.c.b16 %v638, %v637
    %v724 = vpack.c.b16 %v640, %v639
    %v725 = vpack.c.b16 %v642, %v641
    %v726 = vpack.c.b16 %v644, %v643
    %v727 = vpack.c.b16 %v646, %v645
    %v728 = vpack.c.b16 %v648, %v647
    %v729 = vpack.c.b16 %v650, %v649
    %v730 = vpack.c.b16 %v652, %v651
    %v731 = vpack.c.b16 %v654, %v653
    %v732 = vpack.c.b16 %v656, %v655
    %v733 = vpack.c.b16 %v658, %v657
    %v734 = vpack.c.b16 %v660, %v659
    %v735 = vpack.c.b16 %v662, %v661
    %v736 = vpack.c.b16 %v664, %v663
    %v737 = vpack.c.b16 %v666, %v665
    %v738 = vpack.c.b16 %v668, %v667
    %v739 = vpack.c.b16 %v670, %v669
    %v740 = vpack.c.b16 %v672, %v671
    %v741 = vpack.c.b16 %v674, %v673
    %v742 = vpack.c.b16 %v676, %v675
    %v743 = vpack.c.b16 %v678, %v677
    %v744 = vpack.c.b16 %v680, %v679
    %809 = vmatpush.bf16.msra.mxu0 %v688
    %810 = vmatpush.bf16.msra.mxu0 %v687
    %811 = vmatpush.bf16.msra.mxu0 %v686
    %812 = vmatpush.bf16.msra.mxu0 %v685
    %813 = vmatpush.bf16.msra.mxu0 %v684
    %814 = vmatpush.bf16.msra.mxu0 %v683
    %815 = vmatpush.bf16.msra.mxu0 %v682
    %816 = vmatpush.bf16.msra.mxu0 %v681
    %817 = vmatmul.bf16.gmra.mxu0 %v285
    %v818 = vpop.f32.mrf.mxu0
    %v819 = vadd.f32 %v423, %v818
    %v820 = vpop.f32.mrf.mxu0
    %821 = vdwg.mxu0
    %822 = vmatpush.bf16.msra.mxu0 %v696
    %823 = vmatpush.bf16.msra.mxu0 %v695
    %824 = vmatpush.bf16.msra.mxu0 %v694
    %825 = vmatpush.bf16.msra.mxu0 %v693
    %826 = vmatpush.bf16.msra.mxu0 %v692
    %827 = vmatpush.bf16.msra.mxu0 %v691
    %828 = vmatpush.bf16.msra.mxu0 %v690
    %829 = vmatpush.bf16.msra.mxu0 %v689
    %830 = vmatmul.bf16.gmra.mxu0 %v286
    %v831 = vpop.f32.mrf.mxu0
    %v832 = vadd.f32 %v819, %v831
    %v833 = vpop.f32.mrf.mxu0
    %834 = vdwg.mxu0
    %835 = vmatpush.bf16.msra.mxu0 %v704
    %836 = vmatpush.bf16.msra.mxu0 %v703
    %837 = vmatpush.bf16.msra.mxu0 %v702
    %838 = vmatpush.bf16.msra.mxu0 %v701
    %839 = vmatpush.bf16.msra.mxu0 %v700
    %840 = vmatpush.bf16.msra.mxu0 %v699
    %841 = vmatpush.bf16.msra.mxu0 %v698
    %842 = vmatpush.bf16.msra.mxu0 %v697
    %843 = vmatmul.bf16.gmra.mxu0 %v287
    %v844 = vpop.f32.mrf.mxu0
    %v845 = vadd.f32 %v832, %v844
    %v846 = vpop.f32.mrf.mxu0
    %847 = vdwg.mxu0
    %848 = vmatpush.bf16.msra.mxu0 %v712
    %849 = vmatpush.bf16.msra.mxu0 %v711
    %850 = vmatpush.bf16.msra.mxu0 %v710
    %851 = vmatpush.bf16.msra.mxu0 %v709
    %852 = vmatpush.bf16.msra.mxu0 %v708
    %853 = vmatpush.bf16.msra.mxu0 %v707
    %854 = vmatpush.bf16.msra.mxu0 %v706
    %855 = vmatpush.bf16.msra.mxu0 %v705
    %856 = vmatmul.bf16.gmra.mxu0 %v288
    %v857 = vpop.f32.mrf.mxu0
    %v858 = vadd.f32 %v845, %v857
    %v859 = vpop.f32.mrf.mxu0
    %860 = vdwg.mxu0
    %861 = vmatpush.bf16.msra.mxu0 %v720
    %862 = vmatpush.bf16.msra.mxu0 %v719
    %863 = vmatpush.bf16.msra.mxu0 %v718
    %864 = vmatpush.bf16.msra.mxu0 %v717
    %865 = vmatpush.bf16.msra.mxu0 %v716
    %866 = vmatpush.bf16.msra.mxu0 %v715
    %867 = vmatpush.bf16.msra.mxu0 %v714
    %868 = vmatpush.bf16.msra.mxu0 %v713
    %869 = vmatmul.bf16.gmra.mxu0 %v289
    %v870 = vpop.f32.mrf.mxu0
    %v871 = vadd.f32 %v858, %v870
    %v872 = vpop.f32.mrf.mxu0
    %873 = vdwg.mxu0
    %874 = vmatpush.bf16.msra.mxu0 %v728
    %875 = vmatpush.bf16.msra.mxu0 %v727
    %876 = vmatpush.bf16.msra.mxu0 %v726
    %877 = vmatpush.bf16.msra.mxu0 %v725
    %878 = vmatpush.bf16.msra.mxu0 %v724
    %879 = vmatpush.bf16.msra.mxu0 %v723
    %880 = vmatpush.bf16.msra.mxu0 %v722
    %881 = vmatpush.bf16.msra.mxu0 %v721
    %882 = vmatmul.bf16.gmra.mxu0 %v290
    %v883 = vpop.f32.mrf.mxu0
    %v884 = vadd.f32 %v871, %v883
    %v885 = vpop.f32.mrf.mxu0
    %886 = vdwg.mxu0
    %887 = vmatpush.bf16.msra.mxu0 %v736
    %888 = vmatpush.bf16.msra.mxu0 %v735
    %889 = vmatpush.bf16.msra.mxu0 %v734
    %890 = vmatpush.bf16.msra.mxu0 %v733
    %891 = vmatpush.bf16.msra.mxu0 %v732
    %892 = vmatpush.bf16.msra.mxu0 %v731
    %893 = vmatpush.bf16.msra.mxu0 %v730
    %894 = vmatpush.bf16.msra.mxu0 %v729
    %895 = vmatmul.bf16.gmra.mxu0 %v291
    %v896 = vpop.f32.mrf.mxu0
    %v897 = vadd.f32 %v884, %v896
    %v898 = vpop.f32.mrf.mxu0
    %899 = vdwg.mxu0
    %900 = vmatpush.bf16.msra.mxu0 %v744
    %901 = vmatpush.bf16.msra.mxu0 %v743
    %902 = vmatpush.bf16.msra.mxu0 %v742
    %903 = vmatpush.bf16.msra.mxu0 %v741
    %904 = vmatpush.bf16.msra.mxu0 %v740
    %905 = vmatpush.bf16.msra.mxu0 %v739
    %906 = vmatpush.bf16.msra.mxu0 %v738
    %907 = vmatpush.bf16.msra.mxu0 %v737
    %908 = vmatmul.bf16.gmra.mxu0 %v292
    %v909 = vpop.f32.mrf.mxu0
    %v910 = vadd.f32 %v897, %v909
    %v911 = vpop.f32.mrf.mxu0
    %912 = vdwg.mxu0
    %913 = vst [vmem:[#allocation7] sm:$0xff] %v910
    // Predicated region
    $region30: #{fc_layers.1} parent=1 // pred_check
      _
    $region31: #{fc_layers.1} parent=1 // pred_check_branch
      %915 = sbr.rel (0) target = $region33
    $region32: #{fc_layers.1} parent=1 // pred_region
      %917 = vsyncadd [#allocation4], 0
      %s919 = sshll.u32 [#allocation7], 4
      %s920 = int_to_ptr.vmem [resolvable:$true] %s919
      %s921 = sshll.u32 %s5, 4
      %s922 = int_to_ptr.hbm [resolvable:$true] %s921
      %924 = dma.vmem_to_hbm [thread:$0]  %s920, 128, %s922, [#allocation4]
    $region33: #{fc_layers.1} parent=1 // pred_fallthru
      _
    // Predicated region
    $region34: #{fc_layers.1} parent=1 // pred_check
      _
    $region35: #{fc_layers.1} parent=1 // pred_check_branch
      %926 = sbr.rel (0) target = $region37
    $region36: #{fc_layers.1} parent=1 // pred_region
      %928 = dma.done [#allocation4], 128
    $region37: #{fc_layers.1} parent=1 // pred_fallthru
      _
    %929 = vsyncpa [#allocation3], 1
    %930 = vsyncpa [#allocation6], 1
    %931 = vsyncpa [#allocation4], 1

</llo_original>
